<compile_context>
chip_gen: v5e
topology: v5e:2x2
jax: 0.10.0
libtpu: 0.0.40
codegen_flags: <defaults>
</compile_context>

<pallas_src>
import functools

import jax
import jax.numpy as jnp
from jax.experimental import pallas as pl
from jax.experimental.pallas import tpu as pltpu


def _round_up(n, m):
    return ((n + m - 1) // m) * m


def mlp_kernel(x_ref,
               w1_ref, b1_ref,
               w2_ref, b2_ref,
               w3_ref, b3_ref,
               w4_ref, b4_ref,
               o_ref,
               *, bf16_matmul=False):
    """Feature-major fused MLP.

    x_ref:  (6, bm)      activations, batch on the lane axis
    wK_ref: (out, in)    torch-native Linear weight
    bK_ref: (out, 1)     bias, broadcast over the batch/lane axis
    o_ref:  (2, bm)      log-probabilities (lane-dense output)
    """

    def dense(w_ref, b_ref, h):
        w = w_ref[...]
        if bf16_matmul:
            # MXU-native bf16 operands, fp32 accumulation (v6e/v7x).
            w = w.astype(jnp.bfloat16)
            h = h.astype(jnp.bfloat16)
        return jnp.dot(w, h, preferred_element_type=jnp.float32) + b_ref[...]

    h = x_ref[...]                                      # (6,  bm) f32
    h = jnp.maximum(dense(w1_ref, b1_ref, h), 0.0)      # (32, bm)
    h = jnp.maximum(dense(w2_ref, b2_ref, h), 0.0)      # (64, bm)
    h = jnp.maximum(dense(w3_ref, b3_ref, h), 0.0)      # (32, bm)
    logits = dense(w4_ref, b4_ref, h)                   # (2,  bm)

    # 2-class log_softmax along the (size-2) sublane axis: no cross-lane reduce,
    # just two VPU max/add rows and EUP exp/log.
    l0 = logits[0:1, :]
    l1 = logits[1:2, :]
    m = jnp.maximum(l0, l1)                             # (1, bm)
    lse = jnp.log(jnp.exp(l0 - m) + jnp.exp(l1 - m))    # (1, bm)
    o_ref[...] = (logits - m - lse).astype(o_ref.dtype)


def mlp_forward(x, params, *, bm=512, bf16_matmul=False):
    """x: (B, 6) float32. params: torch-native wK (out,in), bK (out,1)."""
    B, F = x.shape
    assert F == 6

    # Batch tile: multiple of 128 (lane-dense), capped so tiny batches do not
    # over-pad; large batches get 512-row tiles to amortize per-step overhead.
    bm = min(bm, _round_up(B, 128))
    bm = _round_up(bm, 128)
    B_pad = _round_up(B, bm)
    grid = (B_pad // bm,)

    # Feature-major input; zero-pad extra batch columns (row-independent, sliced
    # off on the way out, so they cannot contaminate valid outputs).
    x_t = jnp.zeros((6, B_pad), x.dtype).at[:, :B].set(x.T)

    def rep(shape):
        # Parameter blocks replicated (resident) across the batch grid.
        return pl.BlockSpec(shape, lambda i: (0, 0))

    flops = 2 * B_pad * (6 * 32 + 32 * 64 + 64 * 32 + 32 * 2)
    param_bytes = 4 * (6 * 32 + 32 + 32 * 64 + 64 + 64 * 32 + 32 + 32 * 2 + 2)
    cost = pl.CostEstimate(
        flops=flops,
        transcendentals=3 * B_pad,                       # 2x exp + 1x log per column
        bytes_accessed=B_pad * (6 + 2) * 4 + param_bytes,
    )

    out_t = pl.pallas_call(
        functools.partial(mlp_kernel, bf16_matmul=bf16_matmul),
        out_shape=jax.ShapeDtypeStruct((2, B_pad), jnp.float32),
        grid_spec=pltpu.PrefetchScalarGridSpec(
            num_scalar_prefetch=0,
            grid=grid,
            in_specs=[
                pl.BlockSpec((6, bm), lambda i: (0, i)),   # x tile (feature-major)
                rep((32, 6)),  rep((32, 1)),               # layer 1
                rep((64, 32)), rep((64, 1)),               # layer 2
                rep((32, 64)), rep((32, 1)),               # layer 3
                rep((2, 32)),  rep((2, 1)),                # layer 4
            ],
            out_specs=pl.BlockSpec((2, bm), lambda i: (0, i)),
        ),
        compiler_params=pltpu.CompilerParams(
            dimension_semantics=("parallel",)),
        cost_estimate=cost,
    )(x_t,
      params["w1"], params["b1"],
      params["w2"], params["b2"],
      params["w3"], params["b3"],
      params["w4"], params["b4"])

    # Back to (B, 2) row-major, dropping batch padding.
    return out_t[:, :B].T


def init_params(key):
    """Deterministic synthetic init matching nn.Linear shapes.

    torch nn.Linear(in, out) has weight (out, in), bias (out,). We keep the
    torch-native (out, in) weight and store bias as (out, 1) for feature-major
    broadcasting inside the kernel.
    """
    dims = [(6, 32), (32, 64), (64, 32), (32, 2)]
    params = {}
    for idx, (fin, fout) in enumerate(dims, start=1):
        key, kw, kb = jax.random.split(key, 3)
        bound = 1.0 / jnp.sqrt(fin)
        params[f"w{idx}"] = jax.random.uniform(
            kw, (fout, fin), jnp.float32, minval=-bound, maxval=bound)
        params[f"b{idx}"] = jax.random.uniform(
            kb, (fout, 1), jnp.float32, minval=-bound, maxval=bound)
    return params


def mlp_reference(x, params):
    """Pure-JAX reference for verification (batch-major)."""
    h = x
    for idx in range(1, 4):
        h = jnp.maximum(h @ params[f"w{idx}"].T + params[f"b{idx}"][:, 0], 0.0)
    logits = h @ params["w4"].T + params["b4"][:, 0]
    return jax.nn.log_softmax(logits, axis=-1)


if __name__ == "__main__":
    key = jax.random.PRNGKey(0)
    kx, kp = jax.random.split(key)

    B = 32  # matches the module's DataLoader batch_size
    x = jax.random.normal(kx, (B, 6), dtype=jnp.float32)
    params = init_params(kp)

    out = mlp_forward(x, params)
    out = jax.block_until_ready(out)

    ref = mlp_reference(x, params)
    assert out.shape == (B, 2)
    assert jnp.allclose(out, ref, atol=1e-5, rtol=1e-5), "mismatch vs reference"

    # Also exercise a batch that spans multiple grid steps / padding.
    B2 = 300
    x2 = jax.random.normal(kx, (B2, 6), dtype=jnp.float32)
    out2 = jax.block_until_ready(mlp_forward(x2, params, bm=128))
    assert jnp.allclose(out2, mlp_reference(x2, params), atol=1e-5, rtol=1e-5)

    print("KERNEL_OK")
</pallas_src>

<mosaic_0001>
module attributes {stable_mosaic.version = 11 : i64} {
  func.func @mlp_kernel(%arg0: i32, %arg1: memref<6x128xf32, #tpu.memory_space<vmem>>, %arg2: memref<32x6xf32, #tpu.memory_space<vmem>>, %arg3: memref<32x1xf32, #tpu.memory_space<vmem>>, %arg4: memref<64x32xf32, #tpu.memory_space<vmem>>, %arg5: memref<64x1xf32, #tpu.memory_space<vmem>>, %arg6: memref<32x64xf32, #tpu.memory_space<vmem>>, %arg7: memref<32x1xf32, #tpu.memory_space<vmem>>, %arg8: memref<2x32xf32, #tpu.memory_space<vmem>>, %arg9: memref<2x1xf32, #tpu.memory_space<vmem>>, %arg10: memref<2x128xf32, #tpu.memory_space<vmem>>) attributes {dimension_semantics = [#tpu.dimension_semantics<parallel>], iteration_bounds = array<i64: 1>, scalar_prefetch = 0 : i64, scratch_operands = 0 : i64, tpu.core_type = #tpu.core_type<tc>, window_params = [{transform_indices = @transform_0, window_bounds = array<i64: 6, 128>}, {pipeline_mode = #tpu.pipeline_mode<synchronous>, transform_indices = @transform_1, window_bounds = array<i64: 32, 6>}, {pipeline_mode = #tpu.pipeline_mode<synchronous>, transform_indices = @transform_2, window_bounds = array<i64: 32, 1>}, {pipeline_mode = #tpu.pipeline_mode<synchronous>, transform_indices = @transform_3, window_bounds = array<i64: 64, 32>}, {pipeline_mode = #tpu.pipeline_mode<synchronous>, transform_indices = @transform_4, window_bounds = array<i64: 64, 1>}, {pipeline_mode = #tpu.pipeline_mode<synchronous>, transform_indices = @transform_5, window_bounds = array<i64: 32, 64>}, {pipeline_mode = #tpu.pipeline_mode<synchronous>, transform_indices = @transform_6, window_bounds = array<i64: 32, 1>}, {pipeline_mode = #tpu.pipeline_mode<synchronous>, transform_indices = @transform_7, window_bounds = array<i64: 2, 32>}, {pipeline_mode = #tpu.pipeline_mode<synchronous>, transform_indices = @transform_8, window_bounds = array<i64: 2, 1>}, {transform_indices = @transform_9, window_bounds = array<i64: 2, 128>}]} {
    %c0 = arith.constant 0 : index
    %c0_0 = arith.constant 0 : index
    %0 = vector.load %arg1[%c0, %c0_0] : memref<6x128xf32, #tpu.memory_space<vmem>>, vector<6x128xf32>
    %c0_1 = arith.constant 0 : index
    %c0_2 = arith.constant 0 : index
    %1 = vector.load %arg2[%c0_1, %c0_2] : memref<32x6xf32, #tpu.memory_space<vmem>>, vector<32x6xf32>
    %cst = arith.constant dense<0.000000e+00> : vector<32x128xf32>
    %2 = tpu.matmul %1, %0, %cst {dimension_numbers = #tpu.dot_dimension_numbers<[1], [0], [0], [1], [0, 0, 1, 1], [], []>} : vector<32x6xf32>, vector<6x128xf32>, vector<32x128xf32> -> vector<32x128xf32>
    %c0_3 = arith.constant 0 : index
    %c0_4 = arith.constant 0 : index
    %3 = vector.load %arg3[%c0_3, %c0_4] : memref<32x1xf32, #tpu.memory_space<vmem>>, vector<32x1xf32>
    %4 = vector.broadcast %3 : vector<32x1xf32> to vector<32x128xf32>
    %5 = arith.addf %2, %4 : vector<32x128xf32>
    %cst_5 = arith.constant 0.000000e+00 : f32
    %6 = vector.broadcast %cst_5 : f32 to vector<32x128xf32>
    %7 = arith.maximumf %5, %6 : vector<32x128xf32>
    %c0_6 = arith.constant 0 : index
    %c0_7 = arith.constant 0 : index
    %8 = vector.load %arg4[%c0_6, %c0_7] : memref<64x32xf32, #tpu.memory_space<vmem>>, vector<64x32xf32>
    %cst_8 = arith.constant dense<0.000000e+00> : vector<64x128xf32>
    %9 = tpu.matmul %8, %7, %cst_8 {dimension_numbers = #tpu.dot_dimension_numbers<[1], [0], [0], [1], [0, 0, 1, 1], [], []>} : vector<64x32xf32>, vector<32x128xf32>, vector<64x128xf32> -> vector<64x128xf32>
    %c0_9 = arith.constant 0 : index
    %c0_10 = arith.constant 0 : index
    %10 = vector.load %arg5[%c0_9, %c0_10] : memref<64x1xf32, #tpu.memory_space<vmem>>, vector<64x1xf32>
    %11 = vector.broadcast %10 : vector<64x1xf32> to vector<64x128xf32>
    %12 = arith.addf %9, %11 : vector<64x128xf32>
    %cst_11 = arith.constant 0.000000e+00 : f32
    %13 = vector.broadcast %cst_11 : f32 to vector<64x128xf32>
    %14 = arith.maximumf %12, %13 : vector<64x128xf32>
    %c0_12 = arith.constant 0 : index
    %c0_13 = arith.constant 0 : index
    %15 = vector.load %arg6[%c0_12, %c0_13] : memref<32x64xf32, #tpu.memory_space<vmem>>, vector<32x64xf32>
    %cst_14 = arith.constant dense<0.000000e+00> : vector<32x128xf32>
    %16 = tpu.matmul %15, %14, %cst_14 {dimension_numbers = #tpu.dot_dimension_numbers<[1], [0], [0], [1], [0, 0, 1, 1], [], []>} : vector<32x64xf32>, vector<64x128xf32>, vector<32x128xf32> -> vector<32x128xf32>
    %c0_15 = arith.constant 0 : index
    %c0_16 = arith.constant 0 : index
    %17 = vector.load %arg7[%c0_15, %c0_16] : memref<32x1xf32, #tpu.memory_space<vmem>>, vector<32x1xf32>
    %18 = vector.broadcast %17 : vector<32x1xf32> to vector<32x128xf32>
    %19 = arith.addf %16, %18 : vector<32x128xf32>
    %cst_17 = arith.constant 0.000000e+00 : f32
    %20 = vector.broadcast %cst_17 : f32 to vector<32x128xf32>
    %21 = arith.maximumf %19, %20 : vector<32x128xf32>
    %c0_18 = arith.constant 0 : index
    %c0_19 = arith.constant 0 : index
    %22 = vector.load %arg8[%c0_18, %c0_19] : memref<2x32xf32, #tpu.memory_space<vmem>>, vector<2x32xf32>
    %cst_20 = arith.constant dense<0.000000e+00> : vector<2x128xf32>
    %23 = tpu.matmul %22, %21, %cst_20 {dimension_numbers = #tpu.dot_dimension_numbers<[1], [0], [0], [1], [0, 0, 1, 1], [], []>} : vector<2x32xf32>, vector<32x128xf32>, vector<2x128xf32> -> vector<2x128xf32>
    %c0_21 = arith.constant 0 : index
    %c0_22 = arith.constant 0 : index
    %24 = vector.load %arg9[%c0_21, %c0_22] : memref<2x1xf32, #tpu.memory_space<vmem>>, vector<2x1xf32>
    %25 = vector.broadcast %24 : vector<2x1xf32> to vector<2x128xf32>
    %26 = arith.addf %23, %25 : vector<2x128xf32>
    %27 = vector.extract_strided_slice %26 {offsets = [0, 0], sizes = [1, 128], strides = [1, 1]} : vector<2x128xf32> to vector<1x128xf32>
    %28 = vector.extract_strided_slice %26 {offsets = [1, 0], sizes = [1, 128], strides = [1, 1]} : vector<2x128xf32> to vector<1x128xf32>
    %29 = arith.maximumf %27, %28 : vector<1x128xf32>
    %30 = arith.subf %27, %29 : vector<1x128xf32>
    %31 = math.exp %30 : vector<1x128xf32>
    %32 = arith.subf %28, %29 : vector<1x128xf32>
    %33 = math.exp %32 : vector<1x128xf32>
    %34 = arith.addf %31, %33 : vector<1x128xf32>
    %35 = math.log %34 : vector<1x128xf32>
    %36 = vector.broadcast %29 : vector<1x128xf32> to vector<2x128xf32>
    %37 = arith.subf %26, %36 : vector<2x128xf32>
    %38 = vector.broadcast %35 : vector<1x128xf32> to vector<2x128xf32>
    %39 = arith.subf %37, %38 : vector<2x128xf32>
    %c0_23 = arith.constant 0 : index
    %c0_24 = arith.constant 0 : index
    %40 = vector.load %arg10[%c0_23, %c0_24] : memref<2x128xf32, #tpu.memory_space<vmem>>, vector<2x128xf32>
    tpu.vector_store %arg10[%c0_23, %c0_24], %39 {strides = array<i32>} : memref<2x128xf32, #tpu.memory_space<vmem>>, vector<2x128xf32>,
    return
  }
  func.func @transform_0(%arg0: i32) -> (i32, i32) {
    %c0_i32 = arith.constant 0 : i32
    %c0_i32_0 = arith.constant 0 : i32
    return %c0_i32, %arg0 : i32, i32
  }
  func.func @transform_1(%arg0: i32) -> (i32, i32) {
    %c0_i32 = arith.constant 0 : i32
    %c0_i32_0 = arith.constant 0 : i32
    %c0_i32_1 = arith.constant 0 : i32
    return %c0_i32, %c0_i32_0 : i32, i32
  }
  func.func @transform_2(%arg0: i32) -> (i32, i32) {
    %c0_i32 = arith.constant 0 : i32
    %c0_i32_0 = arith.constant 0 : i32
    %c0_i32_1 = arith.constant 0 : i32
    return %c0_i32, %c0_i32_0 : i32, i32
  }
  func.func @transform_3(%arg0: i32) -> (i32, i32) {
    %c0_i32 = arith.constant 0 : i32
    %c0_i32_0 = arith.constant 0 : i32
    %c0_i32_1 = arith.constant 0 : i32
    return %c0_i32, %c0_i32_0 : i32, i32
  }
  func.func @transform_4(%arg0: i32) -> (i32, i32) {
    %c0_i32 = arith.constant 0 : i32
    %c0_i32_0 = arith.constant 0 : i32
    %c0_i32_1 = arith.constant 0 : i32
    return %c0_i32, %c0_i32_0 : i32, i32
  }
  func.func @transform_5(%arg0: i32) -> (i32, i32) {
    %c0_i32 = arith.constant 0 : i32
    %c0_i32_0 = arith.constant 0 : i32
    %c0_i32_1 = arith.constant 0 : i32
    return %c0_i32, %c0_i32_0 : i32, i32
  }
  func.func @transform_6(%arg0: i32) -> (i32, i32) {
    %c0_i32 = arith.constant 0 : i32
    %c0_i32_0 = arith.constant 0 : i32
    %c0_i32_1 = arith.constant 0 : i32
    return %c0_i32, %c0_i32_0 : i32, i32
  }
  func.func @transform_7(%arg0: i32) -> (i32, i32) {
    %c0_i32 = arith.constant 0 : i32
    %c0_i32_0 = arith.constant 0 : i32
    %c0_i32_1 = arith.constant 0 : i32
    return %c0_i32, %c0_i32_0 : i32, i32
  }
  func.func @transform_8(%arg0: i32) -> (i32, i32) {
    %c0_i32 = arith.constant 0 : i32
    %c0_i32_0 = arith.constant 0 : i32
    %c0_i32_1 = arith.constant 0 : i32
    return %c0_i32, %c0_i32_0 : i32, i32
  }
  func.func @transform_9(%arg0: i32) -> (i32, i32) {
    %c0_i32 = arith.constant 0 : i32
    %c0_i32_0 = arith.constant 0 : i32
    return %c0_i32, %arg0 : i32, i32
  }
}

</mosaic_0001>

<llo_original>
// kernel: tpu_custom_call.1
$region0: #{tpu_custom_call.1}
  #allocation0 [shape = 'u32[]', space=smem, size = 0x4, offset = 0x4, fixed_abs, tag = 'smem constant byte address 0x4 - core index']
  #allocation1 [shape = 'u32[72,128]{1,0:T(1,128)}', space=vmem, size = 0x9000, scoped, tag = 'internal scratch']
  %s0 = inlined_call_operand.vmem [shape: f32[6,128], index: 0, kind: input, shape index: {}]
  %s1 = inlined_call_operand.vmem [shape: f32[32,6], index: 1, kind: input, shape index: {}]
  %s2 = inlined_call_operand.vmem [shape: f32[32,1], index: 2, kind: input, shape index: {}]
  %s3 = inlined_call_operand.vmem [shape: f32[64,32], index: 3, kind: input, shape index: {}]
  %s4 = inlined_call_operand.vmem [shape: f32[64,1], index: 4, kind: input, shape index: {}]
  %s5 = inlined_call_operand.vmem [shape: f32[32,64], index: 5, kind: input, shape index: {}]
  %s6 = inlined_call_operand.vmem [shape: f32[32,1], index: 6, kind: input, shape index: {}]
  %s7 = inlined_call_operand.vmem [shape: f32[2,32], index: 7, kind: input, shape index: {}]
  %s8 = inlined_call_operand.vmem [shape: f32[2,1], index: 8, kind: input, shape index: {}]
  %s9 = inlined_call_operand.hbm [shape: f32[2,128], index: 9, kind: output, shape index: {}]
  %s10 = sld [smem:[#allocation0]]
  $region46: #{tpu_custom_call.1} parent=0
    _
  %s12 = ssub.s32 1, %s10
  %s13 = scalar_select 0, %s12, %s10
  $region1: #{tpu_custom_call.1} parent=0
    #allocation2 [shape = 'u8[1024]{0}', space=vmem, size = 0x400, scoped, tag = 'output window, operand 0, single buffered']
    #allocation3 [shape = 's32[1]{0}', space=sflag, size = 0x4, scoped, tag = 'scoped memory for tpu_custom_call.1']
    %14 = vsyncpa [#allocation3], 0
    // Predicated region
    $region2: #{tpu_custom_call.1} parent=1 // pred_check
      _
    $region3: #{tpu_custom_call.1} parent=1 // pred_check_branch
      %16 = sbr.rel (0) target = $region5
    $region4: #{tpu_custom_call.1} parent=1 // pred_region
      _
    $region5: #{tpu_custom_call.1} parent=1 // pred_fallthru
      _
    // Predicated region
    $region6: #{tpu_custom_call.1} parent=1 // pred_check
      _
    $region7: #{tpu_custom_call.1} parent=1 // pred_check_branch
      %18 = sbr.rel (0) target = $region9
    $region8: #{tpu_custom_call.1} parent=1 // pred_region
      _
    $region9: #{tpu_custom_call.1} parent=1 // pred_fallthru
      _
    // Predicated region
    $region10: #{tpu_custom_call.1} parent=1 // pred_check
      _
    $region11: #{tpu_custom_call.1} parent=1 // pred_check_branch
      %20 = sbr.rel (0) target = $region13
    $region12: #{tpu_custom_call.1} parent=1 // pred_region
      _
    $region13: #{tpu_custom_call.1} parent=1 // pred_fallthru
      _
    // Predicated region
    $region14: #{tpu_custom_call.1} parent=1 // pred_check
      _
    $region15: #{tpu_custom_call.1} parent=1 // pred_check_branch
      %22 = sbr.rel (0) target = $region17
    $region16: #{tpu_custom_call.1} parent=1 // pred_region
      _
    $region17: #{tpu_custom_call.1} parent=1 // pred_fallthru
      _
    // Predicated region
    $region18: #{tpu_custom_call.1} parent=1 // pred_check
      _
    $region19: #{tpu_custom_call.1} parent=1 // pred_check_branch
      %24 = sbr.rel (0) target = $region21
    $region20: #{tpu_custom_call.1} parent=1 // pred_region
      _
    $region21: #{tpu_custom_call.1} parent=1 // pred_fallthru
      _
    // Predicated region
    $region22: #{tpu_custom_call.1} parent=1 // pred_check
      _
    $region23: #{tpu_custom_call.1} parent=1 // pred_check_branch
      %26 = sbr.rel (0) target = $region25
    $region24: #{tpu_custom_call.1} parent=1 // pred_region
      _
    $region25: #{tpu_custom_call.1} parent=1 // pred_fallthru
      _
    // Predicated region
    $region26: #{tpu_custom_call.1} parent=1 // pred_check
      _
    $region27: #{tpu_custom_call.1} parent=1 // pred_check_branch
      %28 = sbr.rel (0) target = $region29
    $region28: #{tpu_custom_call.1} parent=1 // pred_region
      _
    $region29: #{tpu_custom_call.1} parent=1 // pred_fallthru
      _
    // Predicated region
    $region30: #{tpu_custom_call.1} parent=1 // pred_check
      _
    $region31: #{tpu_custom_call.1} parent=1 // pred_check_branch
      %30 = sbr.rel (0) target = $region33
    $region32: #{tpu_custom_call.1} parent=1 // pred_region
      _
    $region33: #{tpu_custom_call.1} parent=1 // pred_fallthru
      _
    // Predicated region
    $region34: #{tpu_custom_call.1} parent=1 // pred_check
      _
    $region35: #{tpu_custom_call.1} parent=1 // pred_check_branch
      %32 = sbr.rel (0) target = $region37
    $region36: #{tpu_custom_call.1} parent=1 // pred_region
      _
    $region37: #{tpu_custom_call.1} parent=1 // pred_fallthru
      _
    %v33 = vld [vmem:[%s0] sm:$0x3f]
    %v34 = vld [vmem:[%s1] sm:$0xff]
    %v35 = vld [vmem:[%s1 + $0x8] sm:$0xff]
    %v36 = vld [vmem:[%s1 + $0x10] sm:$0xff]
    %v37 = vld [vmem:[%s1 + $0x18] sm:$0xff]
    %v38 = vld [vmem:[%s2] sm:$0xff]
    %v39 = vld [vmem:[%s2 + $0x8] sm:$0xff]
    %v40 = vld [vmem:[%s2 + $0x10] sm:$0xff]
    %v41 = vld [vmem:[%s2 + $0x18] sm:$0xff]
    %43 = vset.pattern.permute.xlu0 0
    %44 = vperm.xlu0 %43, %v38
    %v45 = vpop.permute.xlu0 %44
    %48 = vset.pattern.permute.xlu0 0
    %49 = vperm.xlu0 %48, %v39
    %v50 = vpop.permute.xlu0 %49
    %53 = vset.pattern.permute.xlu0 0
    %54 = vperm.xlu0 %53, %v40
    %v55 = vpop.permute.xlu0 %54
    %58 = vset.pattern.permute.xlu0 0
    %59 = vperm.xlu0 %58, %v41
    %v60 = vpop.permute.xlu0 %59
    %vm62 = vcmask 48128
    %v64 = vsel %vm62, %v34, 0
    %v67 = vsel %vm62, %v35, 0
    %v70 = vsel %vm62, %v36, 0
    %v73 = vsel %vm62, %v37, 0
    %vm75 = vcmask 1045504
    %v77 = vsel %vm75, %v33, 0
    %79 = vmatpush.msra.mxu0 0.0
    %80 = vmatpush.msra.mxu0 0.0
    %81 = vmatpush.msra.mxu0 0.0
    %82 = vmatpush.msra.mxu0 0.0
    %83 = vmatpush.msra.mxu0 0.0
    %84 = vmatpush.msra.mxu0 0.0
    %85 = vmatpush.msra.mxu0 0.0
    %86 = vmatpush.msra.mxu0 0.0
    %87 = vmatpush.msra.mxu0 0.0
    %88 = vmatpush.msra.mxu0 0.0
    %89 = vmatpush.msra.mxu0 0.0
    %90 = vmatpush.msra.mxu0 0.0
    %91 = vmatpush.msra.mxu0 0.0
    %92 = vmatpush.msra.mxu0 0.0
    %93 = vmatpush.msra.mxu0 0.0
    %94 = vmatpush.msra.mxu0 %v77
    %95 = vmatmul.f32.gmra.mxu0 %v64
    %v96 = vpop.f32.mrf.mxu0
    %v97 = vadd.f32 %v45, %v96
    %98 = vmatmul.f32.gmra.mxu0 %v67
    %v99 = vpop.f32.mrf.mxu0
    %v100 = vadd.f32 %v50, %v99
    %101 = vmatmul.f32.gmra.mxu0 %v70
    %v102 = vpop.f32.mrf.mxu0
    %v103 = vadd.f32 %v55, %v102
    %104 = vmatmul.f32.gmra.mxu0 %v73
    %v105 = vpop.f32.mrf.mxu0
    %v106 = vadd.f32 %v60, %v105
    %107 = vdwg.mxu0
    %v108 = vmax.f32 %v97, 0.0
    %v109 = vmax.f32 %v100, 0.0
    %v110 = vmax.f32 %v103, 0.0
    %v111 = vmax.f32 %v106, 0.0
    %v112 = vld [vmem:[%s3] sm:$0xff]
    %v113 = vld [vmem:[%s3 + $0x8] sm:$0xff]
    %v114 = vld [vmem:[%s3 + $0x10] sm:$0xff]
    %v115 = vld [vmem:[%s3 + $0x18] sm:$0xff]
    %v116 = vld [vmem:[%s3 + $0x20] sm:$0xff]
    %v117 = vld [vmem:[%s3 + $0x28] sm:$0xff]
    %v118 = vld [vmem:[%s3 + $0x30] sm:$0xff]
    %v119 = vld [vmem:[%s3 + $0x38] sm:$0xff]
    %v120 = vld [vmem:[%s4] sm:$0xff]
    %v121 = vld [vmem:[%s4 + $0x8] sm:$0xff]
    %v122 = vld [vmem:[%s4 + $0x10] sm:$0xff]
    %v123 = vld [vmem:[%s4 + $0x18] sm:$0xff]
    %v124 = vld [vmem:[%s4 + $0x20] sm:$0xff]
    %v125 = vld [vmem:[%s4 + $0x28] sm:$0xff]
    %v126 = vld [vmem:[%s4 + $0x30] sm:$0xff]
    %v127 = vld [vmem:[%s4 + $0x38] sm:$0xff]
    %129 = vset.pattern.permute.xlu0 0
    %130 = vperm.xlu0 %129, %v120
    %v131 = vpop.permute.xlu0 %130
    %134 = vset.pattern.permute.xlu0 0
    %135 = vperm.xlu0 %134, %v121
    %v136 = vpop.permute.xlu0 %135
    %139 = vset.pattern.permute.xlu0 0
    %140 = vperm.xlu0 %139, %v122
    %v141 = vpop.permute.xlu0 %140
    %144 = vset.pattern.permute.xlu0 0
    %145 = vperm.xlu0 %144, %v123
    %v146 = vpop.permute.xlu0 %145
    %149 = vset.pattern.permute.xlu0 0
    %150 = vperm.xlu0 %149, %v124
    %v151 = vpop.permute.xlu0 %150
    %154 = vset.pattern.permute.xlu0 0
    %155 = vperm.xlu0 %154, %v125
    %v156 = vpop.permute.xlu0 %155
    %159 = vset.pattern.permute.xlu0 0
    %160 = vperm.xlu0 %159, %v126
    %v161 = vpop.permute.xlu0 %160
    %164 = vset.pattern.permute.xlu0 0
    %165 = vperm.xlu0 %164, %v127
    %v166 = vpop.permute.xlu0 %165
    %vm168 = vcmask 261120
    %v170 = vsel %vm168, %v112, 0
    %v173 = vsel %vm168, %v113, 0
    %v176 = vsel %vm168, %v114, 0
    %v179 = vsel %vm168, %v115, 0
    %v182 = vsel %vm168, %v116, 0
    %v185 = vsel %vm168, %v117, 0
    %v188 = vsel %vm168, %v118, 0
    %v191 = vsel %vm168, %v119, 0
    %193 = vmatpush.msra.mxu0 0.0
    %194 = vmatpush.msra.mxu0 0.0
    %195 = vmatpush.msra.mxu0 0.0
    %196 = vmatpush.msra.mxu0 0.0
    %197 = vmatpush.msra.mxu0 0.0
    %198 = vmatpush.msra.mxu0 0.0
    %199 = vmatpush.msra.mxu0 0.0
    %200 = vmatpush.msra.mxu0 0.0
    %201 = vmatpush.msra.mxu0 0.0
    %202 = vmatpush.msra.mxu0 0.0
    %203 = vmatpush.msra.mxu0 0.0
    %204 = vmatpush.msra.mxu0 0.0
    %205 = vmatpush.msra.mxu0 %v111
    %206 = vmatpush.msra.mxu0 %v110
    %207 = vmatpush.msra.mxu0 %v109
    %208 = vmatpush.msra.mxu0 %v108
    %209 = vmatmul.f32.gmra.mxu0 %v170
    %v210 = vpop.f32.mrf.mxu0
    %v211 = vadd.f32 %v131, %v210
    %212 = vmatmul.f32.gmra.mxu0 %v173
    %v213 = vpop.f32.mrf.mxu0
    %v214 = vadd.f32 %v136, %v213
    %215 = vmatmul.f32.gmra.mxu0 %v176
    %v216 = vpop.f32.mrf.mxu0
    %v217 = vadd.f32 %v141, %v216
    %218 = vmatmul.f32.gmra.mxu0 %v179
    %v219 = vpop.f32.mrf.mxu0
    %v220 = vadd.f32 %v146, %v219
    %221 = vmatmul.f32.gmra.mxu0 %v182
    %v222 = vpop.f32.mrf.mxu0
    %v223 = vadd.f32 %v151, %v222
    %224 = vmatmul.f32.gmra.mxu0 %v185
    %v225 = vpop.f32.mrf.mxu0
    %v226 = vadd.f32 %v156, %v225
    %227 = vmatmul.f32.gmra.mxu0 %v188
    %v228 = vpop.f32.mrf.mxu0
    %v229 = vadd.f32 %v161, %v228
    %230 = vmatmul.f32.gmra.mxu0 %v191
    %v231 = vpop.f32.mrf.mxu0
    %v232 = vadd.f32 %v166, %v231
    %233 = vdwg.mxu0
    %v234 = vmax.f32 %v211, 0.0
    %v235 = vmax.f32 %v214, 0.0
    %v236 = vmax.f32 %v217, 0.0
    %v237 = vmax.f32 %v220, 0.0
    %v238 = vmax.f32 %v223, 0.0
    %v239 = vmax.f32 %v226, 0.0
    %v240 = vmax.f32 %v229, 0.0
    %v241 = vmax.f32 %v232, 0.0
    %v242 = vld [vmem:[%s5] sm:$0xff]
    %v243 = vld [vmem:[%s5 + $0x8] sm:$0xff]
    %v244 = vld [vmem:[%s5 + $0x10] sm:$0xff]
    %v245 = vld [vmem:[%s5 + $0x18] sm:$0xff]
    %v246 = vld [vmem:[%s6] sm:$0xff]
    %v247 = vld [vmem:[%s6 + $0x8] sm:$0xff]
    %v248 = vld [vmem:[%s6 + $0x10] sm:$0xff]
    %v249 = vld [vmem:[%s6 + $0x18] sm:$0xff]
    %251 = vset.pattern.permute.xlu0 0
    %252 = vperm.xlu0 %251, %v246
    %v253 = vpop.permute.xlu0 %252
    %256 = vset.pattern.permute.xlu0 0
    %257 = vperm.xlu0 %256, %v247
    %v258 = vpop.permute.xlu0 %257
    %261 = vset.pattern.permute.xlu0 0
    %262 = vperm.xlu0 %261, %v248
    %v263 = vpop.permute.xlu0 %262
    %266 = vset.pattern.permute.xlu0 0
    %267 = vperm.xlu0 %266, %v249
    %v268 = vpop.permute.xlu0 %267
    %vm270 = vcmask 523264
    %v272 = vsel %vm270, %v242, 0
    %v275 = vsel %vm270, %v243, 0
    %v278 = vsel %vm270, %v244, 0
    %v281 = vsel %vm270, %v245, 0
    %283 = vmatpush.msra.mxu0 0.0
    %284 = vmatpush.msra.mxu0 0.0
    %285 = vmatpush.msra.mxu0 0.0
    %286 = vmatpush.msra.mxu0 0.0
    %287 = vmatpush.msra.mxu0 0.0
    %288 = vmatpush.msra.mxu0 0.0
    %289 = vmatpush.msra.mxu0 0.0
    %290 = vmatpush.msra.mxu0 0.0
    %291 = vmatpush.msra.mxu0 %v241
    %292 = vmatpush.msra.mxu0 %v240
    %293 = vmatpush.msra.mxu0 %v239
    %294 = vmatpush.msra.mxu0 %v238
    %295 = vmatpush.msra.mxu0 %v237
    %296 = vmatpush.msra.mxu0 %v236
    %297 = vmatpush.msra.mxu0 %v235
    %298 = vmatpush.msra.mxu0 %v234
    %299 = vmatmul.f32.gmra.mxu0 %v272
    %v300 = vpop.f32.mrf.mxu0
    %v301 = vadd.f32 %v253, %v300
    %302 = vmatmul.f32.gmra.mxu0 %v275
    %v303 = vpop.f32.mrf.mxu0
    %v304 = vadd.f32 %v258, %v303
    %305 = vmatmul.f32.gmra.mxu0 %v278
    %v306 = vpop.f32.mrf.mxu0
    %v307 = vadd.f32 %v263, %v306
    %308 = vmatmul.f32.gmra.mxu0 %v281
    %v309 = vpop.f32.mrf.mxu0
    %v310 = vadd.f32 %v268, %v309
    %311 = vdwg.mxu0
    %v312 = vmax.f32 %v301, 0.0
    %v313 = vmax.f32 %v304, 0.0
    %v314 = vmax.f32 %v307, 0.0
    %v315 = vmax.f32 %v310, 0.0
    %v316 = vld [vmem:[%s7] sm:$0x3]
    %v317 = vld [vmem:[%s8] sm:$0x3]
    %319 = vset.pattern.permute.xlu0 0
    %320 = vperm.xlu0 %319, %v317
    %v321 = vpop.permute.xlu0 %320
    %v324 = vsel %vm168, %v316, 0
    %326 = vmatpush.msra.mxu0 0.0
    %327 = vmatpush.msra.mxu0 0.0
    %328 = vmatpush.msra.mxu0 0.0
    %329 = vmatpush.msra.mxu0 0.0
    %330 = vmatpush.msra.mxu0 0.0
    %331 = vmatpush.msra.mxu0 0.0
    %332 = vmatpush.msra.mxu0 0.0
    %333 = vmatpush.msra.mxu0 0.0
    %334 = vmatpush.msra.mxu0 0.0
    %335 = vmatpush.msra.mxu0 0.0
    %336 = vmatpush.msra.mxu0 0.0
    %337 = vmatpush.msra.mxu0 0.0
    %338 = vmatpush.msra.mxu0 %v315
    %339 = vmatpush.msra.mxu0 %v314
    %340 = vmatpush.msra.mxu0 %v313
    %341 = vmatpush.msra.mxu0 %v312
    %342 = vmatmul.f32.gmra.mxu0 %v324
    %v343 = vpop.f32.mrf.mxu0
    %v344 = vadd.f32 %v321, %v343
    %345 = vdwg.mxu0
    %v347 = vrot.slane %v344, 1
    %v349 = vmax.f32 %v344, %v347
    %v350 = vsub.f32 %v344, %v349
    %v351 = vmul.f32 %v350, 1.442695
    %v352 = vpow.pop %v351
    %v354 = vrot.slane %v349, 7
    %v356 = vsub.f32 %v344, %v354
    %v357 = vmul.f32 %v356, 1.442695
    %v358 = vpow.pop %v357
    %v360 = vrot.slane %v358, 1
    %v362 = vadd.f32 %v352, %v360
    %v363 = vlog2.pop %v362
    %v364 = vmul.f32 %v363, 0.6931472
    %v365 = vperm.slane %v349, 0
    %v366 = vsub.f32 %v344, %v365
    %v367 = vperm.slane %v364, 0
    %v368 = vsub.f32 %v366, %v367
    %369 = vst [vmem:[#allocation2] sm:$0x3] %v368
    // Predicated region
    $region38: #{tpu_custom_call.1} parent=1 // pred_check
      _
    $region39: #{tpu_custom_call.1} parent=1 // pred_check_branch
      %371 = sbr.rel (0) target = $region41
    $region40: #{tpu_custom_call.1} parent=1 // pred_region
      %373 = vsyncadd [#allocation3], 0
      %s375 = sshll.u32 [#allocation2], 4
      %s376 = int_to_ptr.vmem [resolvable:$true] %s375
      %s377 = sshll.u32 %s9, 4
      %s378 = int_to_ptr.hbm [resolvable:$true] %s377
      %380 = dma.vmem_to_hbm [thread:$0]  %s376, 32, %s378, [#allocation3]
    $region41: #{tpu_custom_call.1} parent=1 // pred_fallthru
      _
    // Predicated region
    $region42: #{tpu_custom_call.1} parent=1 // pred_check
      _
    $region43: #{tpu_custom_call.1} parent=1 // pred_check_branch
      %382 = sbr.rel (0) target = $region45
    $region44: #{tpu_custom_call.1} parent=1 // pred_region
      %384 = dma.done [#allocation3], 32
    $region45: #{tpu_custom_call.1} parent=1 // pred_fallthru
      _
    %385 = vsyncpa [#allocation3], 1

</llo_original>
